<compile_context>
chip_gen: v7x
topology: tpu7x:2x2x1
jax: 0.10.0
libtpu: 0.0.40
codegen_flags: <defaults>
</compile_context>

<pallas_src>
import functools

import jax
import jax.numpy as jnp
from jax.experimental import pallas as pl
from jax.experimental.pallas import tpu as pltpu

_LANE = 128
_SUBLANE = 8


def _round_up(x, m):
    return (x + m - 1) // m * m


def _cmd_kernel(x1_ref, x2_ref, out_ref, *, n_moments, n_moments_pad):
    x1 = x1_ref[...].astype(jnp.float32)  # (N1, TD)
    x2 = x2_ref[...].astype(jnp.float32)  # (N2, TD)

    mx1 = jnp.mean(x1, axis=0, keepdims=True)  # (1, TD)
    mx2 = jnp.mean(x2, axis=0, keepdims=True)  # (1, TD)
    sx1 = x1 - mx1
    sx2 = x2 - mx2

    # Moment-1 term: per-lane squared difference of the means.
    rows = [(mx1 - mx2) ** 2]

    # Central moments k = 2 .. n_moments, with incremental running powers
    # (O(n_moments) multiplies instead of O(n_moments^2) via sx**k).
    p1 = sx1
    p2 = sx2
    for _ in range(n_moments - 1):
        p1 = p1 * sx1
        p2 = p2 * sx2
        ss1 = jnp.mean(p1, axis=0, keepdims=True)  # (1, TD)
        ss2 = jnp.mean(p2, axis=0, keepdims=True)  # (1, TD)
        rows.append((ss1 - ss2) ** 2)

    # Pad the moment rows up to a sublane-aligned count and do ONE full-tile
    # store (no per-row masked read-modify-writes).
    zeros = jnp.zeros_like(rows[0])
    rows.extend([zeros] * (n_moments_pad - n_moments))
    out_ref[...] = jnp.concatenate(rows, axis=0)  # (n_moments_pad, TD)


def _pick_tile(d_pad, n1, n2, n_moments_pad, in_itemsize):
    """Largest lane-aligned feature tile fitting a conservative VMEM budget.

    Per-lane VMEM per grid step is approximated as:
      2x double-buffered input DMA blocks (input dtype)
    + ~4 live f32 (batch, td) temporaries inside the kernel body
    + 2x double-buffered output rows.
    The 24 MiB budget keeps 2-deep pipelining safe on v7x (64 MiB physical
    VMEM) as well as v5e/v6e.
    """
    bytes_per_lane = (2 * (n1 + n2) * in_itemsize
                      + 4 * (n1 + n2) * 4
                      + 2 * n_moments_pad * 4)
    budget = 24 * 1024 * 1024
    td = (budget // bytes_per_lane) // _LANE * _LANE
    # TODO(synk): for very large batches (td forced to 128 still over budget),
    # tile the batch axis with a two-pass (means, then moments) scheme.
    td = max(_LANE, min(td, 2048, d_pad))
    # Re-balance so the feature padding waste is minimal for the tile count.
    num_tiles = -(-d_pad // td)
    td = _round_up(-(-d_pad // num_tiles), _LANE)
    return td


def cmd_pallas(x1, x2, n_moments):
    assert x1.ndim == 2 and x2.ndim == 2 and x1.shape[1] == x2.shape[1]
    assert n_moments >= 1
    n1, d = x1.shape
    n2, _ = x2.shape

    n_moments_pad = _round_up(n_moments, _SUBLANE)
    d_pad = _round_up(d, _LANE)
    td = _pick_tile(d_pad, n1, n2, n_moments_pad, x1.dtype.itemsize)
    d_total = _round_up(d, td)

    # Zero-pad the feature axis: inert for CMD (padded lanes contribute 0 to
    # every per-moment sum).
    if d_total != d:
        x1 = jnp.pad(x1, ((0, 0), (0, d_total - d)))
        x2 = jnp.pad(x2, ((0, 0), (0, d_total - d)))
    grid = (d_total // td,)

    kernel = functools.partial(
        _cmd_kernel, n_moments=n_moments, n_moments_pad=n_moments_pad)

    per_lane = pl.pallas_call(
        kernel,
        out_shape=jax.ShapeDtypeStruct((n_moments_pad, d_total), jnp.float32),
        grid_spec=pltpu.PrefetchScalarGridSpec(
            num_scalar_prefetch=0,
            grid=grid,
            in_specs=[
                pl.BlockSpec((n1, td), lambda j: (0, j)),
                pl.BlockSpec((n2, td), lambda j: (0, j)),
            ],
            out_specs=pl.BlockSpec((n_moments_pad, td), lambda j: (0, j)),
        ),
        compiler_params=pltpu.CompilerParams(
            # Each grid step owns a distinct output column block -> parallel
            # (shards across both TensorCores on v7x).
            dimension_semantics=("parallel",),
            vmem_limit_bytes=48 * 1024 * 1024,
        ),
    )(x1, x2)

    # Tiny epilogue in plain JAX: per-moment sum over features, sqrt, then sum.
    per_moment = jnp.sum(per_lane[:n_moments], axis=1)  # (n_moments,)
    return jnp.sum(jnp.sqrt(per_moment))


def cmd_reference(x1, x2, n_moments):
    """Pure-JAX reference matching the PyTorch CMD module."""
    def matchnorm(a, b):
        return jnp.sum((a - b) ** 2) ** 0.5

    mx1 = jnp.mean(x1, 0)
    mx2 = jnp.mean(x2, 0)
    sx1 = x1 - mx1
    sx2 = x2 - mx2
    scms = matchnorm(mx1, mx2)
    for i in range(n_moments - 1):
        k = i + 2
        scms = scms + matchnorm(jnp.mean(sx1 ** k, 0), jnp.mean(sx2 ** k, 0))
    return scms


if __name__ == "__main__":
    key = jax.random.PRNGKey(0)
    k1, k2 = jax.random.split(key)

    # Small shapes consistent with the module: two feature batches sharing
    # the same hidden dim, possibly different batch sizes.
    n_moments = 5
    x1 = jax.random.normal(k1, (8, 256), dtype=jnp.float32)
    x2 = 0.5 * jax.random.normal(k2, (16, 256), dtype=jnp.float32) + 0.1

    out = cmd_pallas(x1, x2, n_moments)
    out = jax.block_until_ready(out)

    ref = cmd_reference(x1, x2, n_moments)
    assert jnp.allclose(out, ref, rtol=1e-4, atol=1e-4), (out, ref)
    print("KERNEL_OK")
</pallas_src>

<mosaic_0001>
module attributes {stable_mosaic.version = 11 : i64} {
  func.func @_cmd_kernel(%arg0: i32, %arg1: memref<8x256xf32, #tpu.memory_space<vmem>>, %arg2: memref<16x256xf32, #tpu.memory_space<vmem>>, %arg3: memref<8x256xf32, #tpu.memory_space<vmem>>) attributes {dimension_semantics = [#tpu.dimension_semantics<parallel>], iteration_bounds = array<i64: 1>, scalar_prefetch = 0 : i64, scratch_operands = 0 : i64, tpu.core_type = #tpu.core_type<tc>, window_params = [{transform_indices = @transform_0, window_bounds = array<i64: 8, 256>}, {transform_indices = @transform_1, window_bounds = array<i64: 16, 256>}, {transform_indices = @transform_2, window_bounds = array<i64: 8, 256>}]} {
    %c0 = arith.constant 0 : index
    %c0_0 = arith.constant 0 : index
    %0 = vector.load %arg1[%c0, %c0_0] : memref<8x256xf32, #tpu.memory_space<vmem>>, vector<8x256xf32>
    %c0_1 = arith.constant 0 : index
    %c0_2 = arith.constant 0 : index
    %1 = vector.load %arg2[%c0_1, %c0_2] : memref<16x256xf32, #tpu.memory_space<vmem>>, vector<16x256xf32>
    %cst = arith.constant dense<0.000000e+00> : vector<256xf32>
    %2 = vector.multi_reduction <add>, %0, %cst [0] : vector<8x256xf32> to vector<256xf32>
    %3 = vector.shape_cast %2 : vector<256xf32> to vector<1x256xf32>
    %cst_3 = arith.constant 8.000000e+00 : f32
    %4 = vector.broadcast %cst_3 : f32 to vector<1x256xf32>
    %5 = arith.divf %3, %4 : vector<1x256xf32>
    %cst_4 = arith.constant dense<0.000000e+00> : vector<256xf32>
    %6 = vector.multi_reduction <add>, %1, %cst_4 [0] : vector<16x256xf32> to vector<256xf32>
    %7 = vector.shape_cast %6 : vector<256xf32> to vector<1x256xf32>
    %cst_5 = arith.constant 1.600000e+01 : f32
    %8 = vector.broadcast %cst_5 : f32 to vector<1x256xf32>
    %9 = arith.divf %7, %8 : vector<1x256xf32>
    %10 = vector.broadcast %5 : vector<1x256xf32> to vector<8x256xf32>
    %11 = arith.subf %0, %10 : vector<8x256xf32>
    %12 = vector.broadcast %9 : vector<1x256xf32> to vector<16x256xf32>
    %13 = arith.subf %1, %12 : vector<16x256xf32>
    %14 = arith.subf %5, %9 : vector<1x256xf32>
    %15 = arith.mulf %14, %14 : vector<1x256xf32>
    %16 = arith.mulf %11, %11 : vector<8x256xf32>
    %17 = arith.mulf %13, %13 : vector<16x256xf32>
    %cst_6 = arith.constant dense<0.000000e+00> : vector<256xf32>
    %18 = vector.multi_reduction <add>, %16, %cst_6 [0] : vector<8x256xf32> to vector<256xf32>
    %19 = vector.shape_cast %18 : vector<256xf32> to vector<1x256xf32>
    %cst_7 = arith.constant 8.000000e+00 : f32
    %20 = vector.broadcast %cst_7 : f32 to vector<1x256xf32>
    %21 = arith.divf %19, %20 : vector<1x256xf32>
    %cst_8 = arith.constant dense<0.000000e+00> : vector<256xf32>
    %22 = vector.multi_reduction <add>, %17, %cst_8 [0] : vector<16x256xf32> to vector<256xf32>
    %23 = vector.shape_cast %22 : vector<256xf32> to vector<1x256xf32>
    %cst_9 = arith.constant 1.600000e+01 : f32
    %24 = vector.broadcast %cst_9 : f32 to vector<1x256xf32>
    %25 = arith.divf %23, %24 : vector<1x256xf32>
    %26 = arith.subf %21, %25 : vector<1x256xf32>
    %27 = arith.mulf %26, %26 : vector<1x256xf32>
    %28 = arith.mulf %16, %11 : vector<8x256xf32>
    %29 = arith.mulf %17, %13 : vector<16x256xf32>
    %cst_10 = arith.constant dense<0.000000e+00> : vector<256xf32>
    %30 = vector.multi_reduction <add>, %28, %cst_10 [0] : vector<8x256xf32> to vector<256xf32>
    %31 = vector.shape_cast %30 : vector<256xf32> to vector<1x256xf32>
    %cst_11 = arith.constant 8.000000e+00 : f32
    %32 = vector.broadcast %cst_11 : f32 to vector<1x256xf32>
    %33 = arith.divf %31, %32 : vector<1x256xf32>
    %cst_12 = arith.constant dense<0.000000e+00> : vector<256xf32>
    %34 = vector.multi_reduction <add>, %29, %cst_12 [0] : vector<16x256xf32> to vector<256xf32>
    %35 = vector.shape_cast %34 : vector<256xf32> to vector<1x256xf32>
    %cst_13 = arith.constant 1.600000e+01 : f32
    %36 = vector.broadcast %cst_13 : f32 to vector<1x256xf32>
    %37 = arith.divf %35, %36 : vector<1x256xf32>
    %38 = arith.subf %33, %37 : vector<1x256xf32>
    %39 = arith.mulf %38, %38 : vector<1x256xf32>
    %40 = arith.mulf %28, %11 : vector<8x256xf32>
    %41 = arith.mulf %29, %13 : vector<16x256xf32>
    %cst_14 = arith.constant dense<0.000000e+00> : vector<256xf32>
    %42 = vector.multi_reduction <add>, %40, %cst_14 [0] : vector<8x256xf32> to vector<256xf32>
    %43 = vector.shape_cast %42 : vector<256xf32> to vector<1x256xf32>
    %cst_15 = arith.constant 8.000000e+00 : f32
    %44 = vector.broadcast %cst_15 : f32 to vector<1x256xf32>
    %45 = arith.divf %43, %44 : vector<1x256xf32>
    %cst_16 = arith.constant dense<0.000000e+00> : vector<256xf32>
    %46 = vector.multi_reduction <add>, %41, %cst_16 [0] : vector<16x256xf32> to vector<256xf32>
    %47 = vector.shape_cast %46 : vector<256xf32> to vector<1x256xf32>
    %cst_17 = arith.constant 1.600000e+01 : f32
    %48 = vector.broadcast %cst_17 : f32 to vector<1x256xf32>
    %49 = arith.divf %47, %48 : vector<1x256xf32>
    %50 = arith.subf %45, %49 : vector<1x256xf32>
    %51 = arith.mulf %50, %50 : vector<1x256xf32>
    %52 = arith.mulf %40, %11 : vector<8x256xf32>
    %53 = arith.mulf %41, %13 : vector<16x256xf32>
    %cst_18 = arith.constant dense<0.000000e+00> : vector<256xf32>
    %54 = vector.multi_reduction <add>, %52, %cst_18 [0] : vector<8x256xf32> to vector<256xf32>
    %55 = vector.shape_cast %54 : vector<256xf32> to vector<1x256xf32>
    %cst_19 = arith.constant 8.000000e+00 : f32
    %56 = vector.broadcast %cst_19 : f32 to vector<1x256xf32>
    %57 = arith.divf %55, %56 : vector<1x256xf32>
    %cst_20 = arith.constant dense<0.000000e+00> : vector<256xf32>
    %58 = vector.multi_reduction <add>, %53, %cst_20 [0] : vector<16x256xf32> to vector<256xf32>
    %59 = vector.shape_cast %58 : vector<256xf32> to vector<1x256xf32>
    %cst_21 = arith.constant 1.600000e+01 : f32
    %60 = vector.broadcast %cst_21 : f32 to vector<1x256xf32>
    %61 = arith.divf %59, %60 : vector<1x256xf32>
    %62 = arith.subf %57, %61 : vector<1x256xf32>
    %63 = arith.mulf %62, %62 : vector<1x256xf32>
    %cst_22 = arith.constant 0.000000e+00 : f32
    %64 = vector.broadcast %cst_22 : f32 to vector<1x256xf32>
    %65 = tpu.concatenate %15, %27, %39, %51, %63, %64, %64, %64 in 0 : vector<1x256xf32>, vector<1x256xf32>, vector<1x256xf32>, vector<1x256xf32>, vector<1x256xf32>, vector<1x256xf32>, vector<1x256xf32>, vector<1x256xf32> -> vector<8x256xf32>
    %c0_23 = arith.constant 0 : index
    %c0_24 = arith.constant 0 : index
    %66 = vector.load %arg3[%c0_23, %c0_24] : memref<8x256xf32, #tpu.memory_space<vmem>>, vector<8x256xf32>
    tpu.vector_store %arg3[%c0_23, %c0_24], %65 {strides = array<i32>} : memref<8x256xf32, #tpu.memory_space<vmem>>, vector<8x256xf32>,
    return
  }
  func.func @transform_0(%arg0: i32) -> (i32, i32) {
    %c0_i32 = arith.constant 0 : i32
    %c0_i32_0 = arith.constant 0 : i32
    return %c0_i32, %arg0 : i32, i32
  }
  func.func @transform_1(%arg0: i32) -> (i32, i32) {
    %c0_i32 = arith.constant 0 : i32
    %c0_i32_0 = arith.constant 0 : i32
    return %c0_i32, %arg0 : i32, i32
  }
  func.func @transform_2(%arg0: i32) -> (i32, i32) {
    %c0_i32 = arith.constant 0 : i32
    %c0_i32_0 = arith.constant 0 : i32
    return %c0_i32, %arg0 : i32, i32
  }
}

</mosaic_0001>

<llo_original>
// kernel: tpu_custom_call.1
$region0: #{tpu_custom_call.1}
  #allocation0 [shape = 'u32[]', space=smem, size = 0x4, offset = 0x4, fixed_abs, tag = 'smem constant byte address 0x4 - core index']
  #allocation1 [shape = 'u32[144,128]{1,0:T(1,128)}', space=vmem, size = 0x12000, scoped, tag = 'internal scratch']
  %s0 = inlined_call_operand.hbm [shape: f32[8,256], index: 0, kind: input, shape index: {}]
  %s1 = inlined_call_operand.hbm [shape: f32[16,256], index: 1, kind: input, shape index: {}]
  %s2 = inlined_call_operand.hbm [shape: f32[8,256], index: 2, kind: output, shape index: {}]
  %s3 = sld [smem:[#allocation0]]
  $region26: #{tpu_custom_call.1} parent=0
    _
  %s5 = ssub.s32 1, %s3
  %s6 = scalar_select 0, %s5, %s3
  $region1: #{tpu_custom_call.1} parent=0
    #allocation2 [shape = 'u8[8192]{0}', space=vmem, size = 0x2000, scoped, tag = 'input window, operand 0, single buffered']
    #allocation3 [shape = 's32[1]{0}', space=sflag, size = 0x4, scoped, tag = 'scoped memory for tpu_custom_call.1']
    #allocation4 [shape = 's32[1]{0}', space=sflag, size = 0x4, scoped, tag = 'scoped memory for tpu_custom_call.1']
    #allocation5 [shape = 'u8[16384]{0}', space=vmem, size = 0x4000, scoped, tag = 'input window, operand 1, single buffered']
    #allocation6 [shape = 's32[1]{0}', space=sflag, size = 0x4, scoped, tag = 'scoped memory for tpu_custom_call.1']
    #allocation7 [shape = 'u8[8192]{0}', space=vmem, size = 0x2000, scoped, tag = 'output window, operand 0, single buffered']
    %7 = vsyncpa [#allocation3], 0
    %8 = vsyncpa [#allocation6], 0
    %9 = vsyncpa [#allocation4], 0
    // Predicated region
    $region2: #{tpu_custom_call.1} parent=1 // pred_check
      _
    $region3: #{tpu_custom_call.1} parent=1 // pred_check_branch
      %11 = sbr.rel (0) target = $region5
    $region4: #{tpu_custom_call.1} parent=1 // pred_region
      %s13 = ssub.s32 256, 256
      %14 = vsyncadd [#allocation3], %s13
      %s16 = sshll.u32 [#allocation2], 4
      %s17 = int_to_ptr.vmem [resolvable:$true] %s16
      %19 = dma.hbm_to_vmem [thread:$0]  %s0, 256, %s17, [#allocation3]
    $region5: #{tpu_custom_call.1} parent=1 // pred_fallthru
      _
    // Predicated region
    $region6: #{tpu_custom_call.1} parent=1 // pred_check
      _
    $region7: #{tpu_custom_call.1} parent=1 // pred_check_branch
      %21 = sbr.rel (0) target = $region9
    $region8: #{tpu_custom_call.1} parent=1 // pred_region
      %s23 = ssub.s32 512, 512
      %24 = vsyncadd [#allocation6], %s23
      %s25 = sshll.u32 [#allocation5], 4
      %s26 = int_to_ptr.vmem [resolvable:$true] %s25
      %31 = dma.hbm_to_vmem [thread:$0]  %s1, 512, %s26, [#allocation6], 256, 256, 16
    $region9: #{tpu_custom_call.1} parent=1 // pred_fallthru
      _
    // Predicated region
    $region10: #{tpu_custom_call.1} parent=1 // pred_check
      _
    $region11: #{tpu_custom_call.1} parent=1 // pred_check_branch
      %33 = sbr.rel (0) target = $region13
    $region12: #{tpu_custom_call.1} parent=1 // pred_region
      %34 = dma.done [#allocation3], 256
    $region13: #{tpu_custom_call.1} parent=1 // pred_fallthru
      _
    // Predicated region
    $region14: #{tpu_custom_call.1} parent=1 // pred_check
      _
    $region15: #{tpu_custom_call.1} parent=1 // pred_check_branch
      %36 = sbr.rel (0) target = $region17
    $region16: #{tpu_custom_call.1} parent=1 // pred_region
      %37 = dma.done [#allocation6], 512
    $region17: #{tpu_custom_call.1} parent=1 // pred_fallthru
      _
    %v38 = vld [vmem:[#allocation2] sm:$0xff]
    %v39 = vld [vmem:[#allocation2 + $0x8] sm:$0xff]
    %v40 = vld [vmem:[#allocation5] sm:$0xff]
    %v41 = vld [vmem:[#allocation5 + $0x8] sm:$0xff]
    %v42 = vld [vmem:[#allocation5 + $0x10] sm:$0xff]
    %v43 = vld [vmem:[#allocation5 + $0x18] sm:$0xff]
    %v44 = vrot.slane %v38, 4
    %v45 = vadd.f32 %v38, %v44
    %v46 = vrot.slane %v45, 2
    %v47 = vadd.f32 %v45, %v46
    %v48 = vrot.slane %v47, 1
    %v49 = vadd.f32 %v47, %v48
    %v50 = vrot.slane %v39, 4
    %v51 = vadd.f32 %v39, %v50
    %v52 = vrot.slane %v51, 2
    %v53 = vadd.f32 %v51, %v52
    %v54 = vrot.slane %v53, 1
    %v55 = vadd.f32 %v53, %v54
    %v56 = vrcp.pop 8.0
    %v57 = vmul.f32 %v49, %v56
    %v58 = vmul.f32 %v55, %v56
    %v59 = vadd.f32 %v40, %v42
    %v60 = vrot.slane %v59, 4
    %v61 = vadd.f32 %v59, %v60
    %v62 = vrot.slane %v61, 2
    %v63 = vadd.f32 %v61, %v62
    %v64 = vrot.slane %v63, 1
    %v65 = vadd.f32 %v63, %v64
    %v66 = vadd.f32 %v41, %v43
    %v67 = vrot.slane %v66, 4
    %v68 = vadd.f32 %v66, %v67
    %v69 = vrot.slane %v68, 2
    %v70 = vadd.f32 %v68, %v69
    %v71 = vrot.slane %v70, 1
    %v72 = vadd.f32 %v70, %v71
    %v73 = vrcp.pop 16.0
    %v74 = vmul.f32 %v65, %v73
    %v75 = vmul.f32 %v72, %v73
    %v76 = vsub.f32 %v38, %v57
    %v77 = vsub.f32 %v39, %v58
    %v78 = vsub.f32 %v40, %v74
    %v79 = vsub.f32 %v41, %v75
    %v80 = vsub.f32 %v42, %v74
    %v81 = vsub.f32 %v43, %v75
    %v82 = vsub.f32 %v57, %v74
    %v83 = vsub.f32 %v58, %v75
    %v84 = vmul.f32 %v82, %v82
    %v85 = vmul.f32 %v83, %v83
    %v86 = vmul.f32 %v76, %v76
    %v87 = vmul.f32 %v77, %v77
    %v88 = vmul.f32 %v78, %v78
    %v89 = vmul.f32 %v79, %v79
    %v90 = vmul.f32 %v80, %v80
    %v91 = vmul.f32 %v81, %v81
    %v92 = vrot.slane %v86, 4
    %v93 = vadd.f32 %v86, %v92
    %v94 = vrot.slane %v93, 2
    %v95 = vadd.f32 %v93, %v94
    %v96 = vrot.slane %v95, 1
    %v97 = vadd.f32 %v95, %v96
    %v98 = vrot.slane %v87, 4
    %v99 = vadd.f32 %v87, %v98
    %v100 = vrot.slane %v99, 2
    %v101 = vadd.f32 %v99, %v100
    %v102 = vrot.slane %v101, 1
    %v103 = vadd.f32 %v101, %v102
    %v104 = vmul.f32 %v97, %v56
    %v105 = vmul.f32 %v103, %v56
    %v106 = vadd.f32 %v88, %v90
    %v107 = vrot.slane %v106, 4
    %v108 = vadd.f32 %v106, %v107
    %v109 = vrot.slane %v108, 2
    %v110 = vadd.f32 %v108, %v109
    %v111 = vrot.slane %v110, 1
    %v112 = vadd.f32 %v110, %v111
    %v113 = vadd.f32 %v89, %v91
    %v114 = vrot.slane %v113, 4
    %v115 = vadd.f32 %v113, %v114
    %v116 = vrot.slane %v115, 2
    %v117 = vadd.f32 %v115, %v116
    %v118 = vrot.slane %v117, 1
    %v119 = vadd.f32 %v117, %v118
    %v120 = vmul.f32 %v112, %v73
    %v121 = vmul.f32 %v119, %v73
    %v122 = vsub.f32 %v104, %v120
    %v123 = vsub.f32 %v105, %v121
    %v124 = vmul.f32 %v122, %v122
    %v125 = vmul.f32 %v123, %v123
    %v126 = vmul.f32 %v86, %v76
    %v127 = vmul.f32 %v87, %v77
    %v128 = vmul.f32 %v88, %v78
    %v129 = vmul.f32 %v89, %v79
    %v130 = vmul.f32 %v90, %v80
    %v131 = vmul.f32 %v91, %v81
    %v132 = vrot.slane %v126, 4
    %v133 = vadd.f32 %v126, %v132
    %v134 = vrot.slane %v133, 2
    %v135 = vadd.f32 %v133, %v134
    %v136 = vrot.slane %v135, 1
    %v137 = vadd.f32 %v135, %v136
    %v138 = vrot.slane %v127, 4
    %v139 = vadd.f32 %v127, %v138
    %v140 = vrot.slane %v139, 2
    %v141 = vadd.f32 %v139, %v140
    %v142 = vrot.slane %v141, 1
    %v143 = vadd.f32 %v141, %v142
    %v144 = vmul.f32 %v137, %v56
    %v145 = vmul.f32 %v143, %v56
    %v146 = vadd.f32 %v128, %v130
    %v147 = vrot.slane %v146, 4
    %v148 = vadd.f32 %v146, %v147
    %v149 = vrot.slane %v148, 2
    %v150 = vadd.f32 %v148, %v149
    %v151 = vrot.slane %v150, 1
    %v152 = vadd.f32 %v150, %v151
    %v153 = vadd.f32 %v129, %v131
    %v154 = vrot.slane %v153, 4
    %v155 = vadd.f32 %v153, %v154
    %v156 = vrot.slane %v155, 2
    %v157 = vadd.f32 %v155, %v156
    %v158 = vrot.slane %v157, 1
    %v159 = vadd.f32 %v157, %v158
    %v160 = vmul.f32 %v152, %v73
    %v161 = vmul.f32 %v159, %v73
    %v162 = vsub.f32 %v144, %v160
    %v163 = vsub.f32 %v145, %v161
    %v164 = vmul.f32 %v162, %v162
    %v165 = vmul.f32 %v163, %v163
    %v166 = vmul.f32 %v126, %v76
    %v167 = vmul.f32 %v127, %v77
    %v168 = vmul.f32 %v128, %v78
    %v169 = vmul.f32 %v129, %v79
    %v170 = vmul.f32 %v130, %v80
    %v171 = vmul.f32 %v131, %v81
    %v172 = vrot.slane %v166, 4
    %v173 = vadd.f32 %v166, %v172
    %v174 = vrot.slane %v173, 2
    %v175 = vadd.f32 %v173, %v174
    %v176 = vrot.slane %v175, 1
    %v177 = vadd.f32 %v175, %v176
    %v178 = vrot.slane %v167, 4
    %v179 = vadd.f32 %v167, %v178
    %v180 = vrot.slane %v179, 2
    %v181 = vadd.f32 %v179, %v180
    %v182 = vrot.slane %v181, 1
    %v183 = vadd.f32 %v181, %v182
    %v184 = vmul.f32 %v177, %v56
    %v185 = vmul.f32 %v183, %v56
    %v186 = vadd.f32 %v168, %v170
    %v187 = vrot.slane %v186, 4
    %v188 = vadd.f32 %v186, %v187
    %v189 = vrot.slane %v188, 2
    %v190 = vadd.f32 %v188, %v189
    %v191 = vrot.slane %v190, 1
    %v192 = vadd.f32 %v190, %v191
    %v193 = vadd.f32 %v169, %v171
    %v194 = vrot.slane %v193, 4
    %v195 = vadd.f32 %v193, %v194
    %v196 = vrot.slane %v195, 2
    %v197 = vadd.f32 %v195, %v196
    %v198 = vrot.slane %v197, 1
    %v199 = vadd.f32 %v197, %v198
    %v200 = vmul.f32 %v192, %v73
    %v201 = vmul.f32 %v199, %v73
    %v202 = vsub.f32 %v184, %v200
    %v203 = vsub.f32 %v185, %v201
    %v204 = vmul.f32 %v202, %v202
    %v205 = vmul.f32 %v203, %v203
    %v206 = vmul.f32 %v166, %v76
    %v207 = vmul.f32 %v167, %v77
    %v208 = vmul.f32 %v168, %v78
    %v209 = vmul.f32 %v169, %v79
    %v210 = vmul.f32 %v170, %v80
    %v211 = vmul.f32 %v171, %v81
    %v212 = vrot.slane %v206, 4
    %v213 = vadd.f32 %v206, %v212
    %v214 = vrot.slane %v213, 2
    %v215 = vadd.f32 %v213, %v214
    %v216 = vrot.slane %v215, 1
    %v217 = vadd.f32 %v215, %v216
    %v218 = vrot.slane %v207, 4
    %v219 = vadd.f32 %v207, %v218
    %v220 = vrot.slane %v219, 2
    %v221 = vadd.f32 %v219, %v220
    %v222 = vrot.slane %v221, 1
    %v223 = vadd.f32 %v221, %v222
    %v224 = vmul.f32 %v217, %v56
    %v225 = vmul.f32 %v223, %v56
    %v226 = vadd.f32 %v208, %v210
    %v227 = vrot.slane %v226, 4
    %v228 = vadd.f32 %v226, %v227
    %v229 = vrot.slane %v228, 2
    %v230 = vadd.f32 %v228, %v229
    %v231 = vrot.slane %v230, 1
    %v232 = vadd.f32 %v230, %v231
    %v233 = vadd.f32 %v209, %v211
    %v234 = vrot.slane %v233, 4
    %v235 = vadd.f32 %v233, %v234
    %v236 = vrot.slane %v235, 2
    %v237 = vadd.f32 %v235, %v236
    %v238 = vrot.slane %v237, 1
    %v239 = vadd.f32 %v237, %v238
    %v240 = vmul.f32 %v232, %v73
    %v241 = vmul.f32 %v239, %v73
    %v242 = vsub.f32 %v224, %v240
    %v243 = vsub.f32 %v225, %v241
    %v244 = vmul.f32 %v242, %v242
    %v245 = vmul.f32 %v243, %v243
    %vm246 = vcmask 1040384
    %v247 = vsel %vm246, %v84, %v124
    %v248 = vsel %vm246, %v85, %v125
    %vm249 = vcmask 1041408
    %v250 = vsel %vm249, %v247, %v164
    %v251 = vsel %vm249, %v248, %v165
    %vm252 = vcmask 1042432
    %v253 = vsel %vm252, %v250, %v204
    %v254 = vsel %vm252, %v251, %v205
    %vm255 = vcmask 1043456
    %v256 = vsel %vm255, %v253, %v244
    %v257 = vsel %vm255, %v254, %v245
    %vm258 = vcmask 1044480
    %v259 = vsel %vm258, %v256, 0.0
    %v260 = vsel %vm258, %v257, 0.0
    %vm261 = vcmask 1045504
    %v262 = vsel %vm261, %v259, 0.0
    %v263 = vsel %vm261, %v260, 0.0
    %vm264 = vcmask 1046528
    %v265 = vsel %vm264, %v262, 0.0
    %v266 = vsel %vm264, %v263, 0.0
    %267 = vst [vmem:[#allocation7] sm:$0xff] %v265
    %268 = vst [vmem:[#allocation7 + $0x8] sm:$0xff] %v266
    // Predicated region
    $region18: #{tpu_custom_call.1} parent=1 // pred_check
      _
    $region19: #{tpu_custom_call.1} parent=1 // pred_check_branch
      %270 = sbr.rel (0) target = $region21
    $region20: #{tpu_custom_call.1} parent=1 // pred_region
      %s272 = ssub.s32 256, 256
      %273 = vsyncadd [#allocation4], %s272
      %s275 = sshll.u32 [#allocation7], 4
      %s276 = int_to_ptr.vmem [resolvable:$true] %s275
      %278 = dma.vmem_to_hbm [thread:$0]  %s276, 256, %s2, [#allocation4]
    $region21: #{tpu_custom_call.1} parent=1 // pred_fallthru
      _
    // Predicated region
    $region22: #{tpu_custom_call.1} parent=1 // pred_check
      _
    $region23: #{tpu_custom_call.1} parent=1 // pred_check_branch
      %280 = sbr.rel (0) target = $region25
    $region24: #{tpu_custom_call.1} parent=1 // pred_region
      %281 = dma.done [#allocation4], 256
    $region25: #{tpu_custom_call.1} parent=1 // pred_fallthru
      _
    %282 = vsyncpa [#allocation3], 1
    %283 = vsyncpa [#allocation6], 1
    %284 = vsyncpa [#allocation4], 1

</llo_original>
